<compile_context>
chip_gen: v5e
topology: v5e:2x2
jax: 0.10.0
libtpu: 0.0.40
codegen_flags: <defaults>
</compile_context>

<pallas_src>
import functools

import jax
import jax.numpy as jnp
from jax.experimental import pallas as pl
from jax.experimental.pallas import tpu as pltpu

LOCATION_MAPPING = {'Tubulin': 0, 'Actin': 1, 'Mitochondria': 2}
N_LOC = len(LOCATION_MAPPING)          # 3
HID = 128                              # hidden / output dim of loc MLP


# ---------------------------------------------------------------------------
# Pallas kernel: Linear(3->128) -> ReLU -> Linear(128->128).
# Both layers on the MXU; layer 2 uses bf16 operands with f32 accumulation.
# ---------------------------------------------------------------------------
def _loc_mlp_kernel(x_ref, w1_ref, b1_ref, w2_ref, b2_ref, o_ref, *, mxu_dtype):
    x = x_ref[...].astype(jnp.float32)                       # (rows, 3)

    # Layer 1: K=3 matmul (zero-padded) -- one MXU pass per 128-row chunk.
    # The MXU has slack here (kernel is HBM/launch bound), so this is free
    # and avoids per-vreg lane broadcasts.
    h = jnp.dot(x, w1_ref[...], preferred_element_type=jnp.float32)
    h = jnp.maximum(h + b1_ref[...], 0.0)                    # bias + ReLU

    # Layer 2: 128x128 matmul, bf16 operands, f32 accumulation.
    o = jnp.dot(h.astype(mxu_dtype), w2_ref[...].astype(mxu_dtype),
                preferred_element_type=jnp.float32)
    o_ref[...] = (o + b2_ref[...]).astype(o_ref.dtype)


def _choose_tile_b(batch_size, max_tile_b=2048):
    """Multiple of 128, capped at max_tile_b, targeting >= 4 grid tiles so the
    'parallel' batch axis can be sharded across v7x's two TensorCores."""
    quarter = -(-batch_size // 4)
    tile = ((quarter + 127) // 128) * 128
    return max(128, min(max_tile_b, tile))


def loc_embedding_pallas(loc_classes, w1, b1, w2, b2, *,
                         tile_b=None, single_block_rows=1024,
                         mxu_bf16=True, out_dtype=jnp.float32):
    """loc_classes: (B, N_LOC) float32.  Returns (B, HID) out_dtype."""
    B = loc_classes.shape[0]
    mxu_dtype = jnp.bfloat16 if mxu_bf16 else jnp.float32
    b1_2d = b1.reshape(1, HID).astype(jnp.float32)
    b2_2d = b2.reshape(1, HID).astype(jnp.float32)
    # Ship W2 in its MXU dtype (halves its DMA; in-kernel cast becomes a no-op).
    w2_k = w2.astype(mxu_dtype)
    w1_k = w1.astype(jnp.float32)

    kernel = functools.partial(_loc_mlp_kernel, mxu_dtype=mxu_dtype)

    out_bytes = jnp.dtype(out_dtype).itemsize
    cost = pl.CostEstimate(
        flops=2 * B * N_LOC * HID + 2 * B * HID * HID,
        transcendentals=0,
        bytes_accessed=(B * N_LOC * 4 + B * HID * out_bytes
                        + (N_LOC * HID + 2 * HID) * 4
                        + HID * HID * jnp.dtype(mxu_dtype).itemsize),
    )

    if B <= single_block_rows:
        # Single block, no grid: every operand is placed whole in VMEM.
        # No per-step pipeline overhead, no host-side padding.
        return pl.pallas_call(
            kernel,
            out_shape=jax.ShapeDtypeStruct((B, HID), out_dtype),
            cost_estimate=cost,
        )(loc_classes, w1_k, b1_2d, w2_k, b2_2d)

    # Large-B path: tile the batch.  Weights/biases stay VMEM-resident
    # (index_map always (0, 0)); pl.cdiv grid + Pallas' masked partial last
    # block avoids any host-side pad copy; "parallel" lets v7x shard tiles
    # over its two TensorCores.
    if tile_b is None:
        tile_b = _choose_tile_b(B)
    grid = (pl.cdiv(B, tile_b),)
    return pl.pallas_call(
        kernel,
        out_shape=jax.ShapeDtypeStruct((B, HID), out_dtype),
        grid=grid,
        in_specs=[
            pl.BlockSpec((tile_b, N_LOC), lambda i: (i, 0)),   # x tile
            pl.BlockSpec((N_LOC, HID), lambda i: (0, 0)),      # W1 (resident)
            pl.BlockSpec((1, HID), lambda i: (0, 0)),          # b1 (resident)
            pl.BlockSpec((HID, HID), lambda i: (0, 0)),        # W2 (resident)
            pl.BlockSpec((1, HID), lambda i: (0, 0)),          # b2 (resident)
        ],
        out_specs=pl.BlockSpec((tile_b, HID), lambda i: (i, 0)),
        compiler_params=pltpu.CompilerParams(
            dimension_semantics=("parallel",)),
        cost_estimate=cost,
    )(loc_classes, w1_k, b1_2d, w2_k, b2_2d)


# ---------------------------------------------------------------------------
# JAX-side module mirroring BFClassEmbedder.forward semantics.
# ---------------------------------------------------------------------------
class BFClassEmbedder:
    def __init__(self, include_location=False, include_ref_image=True,
                 include_cellline=False, use_loc_embedding=False,
                 image_embedding_model=None, rng_key=None,
                 assume_onehot=False, pallas_min_rows=1024):
        self.include_location = include_location
        self.include_ref_image = include_ref_image
        self.include_cellline = include_cellline
        self.use_loc_embedding = use_loc_embedding
        self.image_embedding_model = image_embedding_model
        self.assume_onehot = assume_onehot
        self.pallas_min_rows = pallas_min_rows

        if self.use_loc_embedding:
            # Same shapes as nn.Linear(3,128) / nn.Linear(128,128); stored as
            # (in, out) so y = x @ W + b.
            k = rng_key if rng_key is not None else jax.random.PRNGKey(42)
            k1, k2, k3, k4 = jax.random.split(k, 4)
            lim1 = 1.0 / jnp.sqrt(N_LOC)
            lim2 = 1.0 / jnp.sqrt(HID)
            self.w1 = jax.random.uniform(k1, (N_LOC, HID), jnp.float32, -lim1, lim1)
            self.b1 = jax.random.uniform(k2, (HID,), jnp.float32, -lim1, lim1)
            self.w2 = jax.random.uniform(k3, (HID, HID), jnp.float32, -lim2, lim2)
            self.b2 = jax.random.uniform(k4, (HID,), jnp.float32, -lim2, lim2)
            if self.assume_onehot:
                # Valid ONLY for strictly one-hot location_classes (ReLU is
                # nonlinear): T[k] = MLP(e_k).  MLP collapses to a row gather
                # expressed as x @ T (tiny (B,3)@(3,128)).
                hi = jnp.maximum(self.w1 + self.b1, 0.0)
                self.onehot_table = (
                    jnp.dot(hi, self.w2, precision=jax.lax.Precision.HIGHEST)
                    + self.b2)

    def _loc_mlp(self, x):
        B = x.shape[0]
        if self.assume_onehot:
            return jnp.dot(x, self.onehot_table,
                           preferred_element_type=jnp.float32)
        if B < self.pallas_min_rows:
            # Common tiny-batch case: pallas_call launch + DMA latency would
            # dwarf the compute; let XLA fuse the whole MLP.
            h = jnp.maximum(x @ self.w1 + self.b1, 0.0)
            return h @ self.w2 + self.b2
        return loc_embedding_pallas(x, self.w1, self.b1, self.w2, self.b2)

    def __call__(self, batch, key=None):
        conditions = dict()
        embed = []
        if self.include_cellline:
            embed.append(batch['cell-line'])
        if 'seq_embed' in batch:
            embed.append(batch['seq_embed'])
        if self.include_location:
            if self.use_loc_embedding:
                embed.append(self._loc_mlp(batch['location_classes']))
            else:
                embed.append(batch['location_classes'])
        if 'densent_avg' in batch:
            embed.append(batch['densent_avg'])
        if embed:
            conditions['c_crossattn'] = embed
        if self.include_ref_image:
            # TODO(synk): image_embedding_model.encode/decode come from an
            # external instantiate_from_config model; no definition to port.
            raise NotImplementedError(
                "ref-image encoding requires an external image_embedding_model")
        return conditions


# ---------------------------------------------------------------------------
# Pure-JAX f32 (HIGHEST precision) reference for the loc MLP.
# ---------------------------------------------------------------------------
def _loc_mlp_ref(x, w1, b1, w2, b2):
    hp = jax.lax.Precision.HIGHEST
    h = jnp.maximum(jnp.dot(x, w1, precision=hp) + b1, 0.0)
    return jnp.dot(h, w2, precision=hp) + b2


if __name__ == "__main__":
    key = jax.random.PRNGKey(0)
    k_seq, k_loc, k_dn, k_param, k_loc2 = jax.random.split(key, 5)

    B = 8           # batch
    SEQ_D = 32      # seq_embed hidden dim (pre-computed, passed through)

    # One-hot location classes over the 3 locations.
    loc_idx = jax.random.randint(k_loc, (B,), 0, N_LOC)
    location_classes = jax.nn.one_hot(loc_idx, N_LOC, dtype=jnp.float32)

    batch = {
        'seq_embed': jax.random.normal(k_seq, (B, SEQ_D), jnp.float32),
        'location_classes': location_classes,
        'densent_avg': jax.random.normal(k_dn, (B, SEQ_D), jnp.float32),
    }

    embedder = BFClassEmbedder(include_location=True,
                               include_ref_image=False,
                               include_cellline=False,
                               use_loc_embedding=True,
                               rng_key=k_param)

    ref_small = _loc_mlp_ref(location_classes, embedder.w1, embedder.b1,
                             embedder.w2, embedder.b2)

    # --- Path 1: Pallas single-block kernel at small B ---------------------
    out_small = loc_embedding_pallas(location_classes, embedder.w1, embedder.b1,
                                     embedder.w2, embedder.b2)
    jax.block_until_ready(out_small)
    assert out_small.shape == (B, HID)
    assert jnp.allclose(out_small, ref_small, atol=2e-2, rtol=2e-2)

    # --- Path 2: Pallas gridded kernel, partial last tile ------------------
    B2 = 1000  # not a multiple of tile_b -> exercises masked partial block
    loc_idx2 = jax.random.randint(k_loc2, (B2,), 0, N_LOC)
    loc2 = jax.nn.one_hot(loc_idx2, N_LOC, dtype=jnp.float32)
    out_large = loc_embedding_pallas(loc2, embedder.w1, embedder.b1,
                                     embedder.w2, embedder.b2,
                                     tile_b=256, single_block_rows=0)
    jax.block_until_ready(out_large)
    ref_large = _loc_mlp_ref(loc2, embedder.w1, embedder.b1,
                             embedder.w2, embedder.b2)
    assert out_large.shape == (B2, HID)
    assert jnp.allclose(out_large, ref_large, atol=2e-2, rtol=2e-2)

    # --- Path 3: module forward (small-batch XLA-fused path, per review) ---
    conditions = embedder(batch)
    embed_list = conditions['c_crossattn']
    for t in embed_list:
        jax.block_until_ready(t)
    assert len(embed_list) == 3
    assert embed_list[0].shape == (B, SEQ_D)
    assert embed_list[1].shape == (B, HID)
    assert embed_list[2].shape == (B, SEQ_D)
    assert jnp.allclose(embed_list[1], ref_small, atol=2e-2, rtol=2e-2)

    # --- Path 4: one-hot table variant (valid for strictly one-hot input) --
    embedder_tab = BFClassEmbedder(include_location=True,
                                   include_ref_image=False,
                                   use_loc_embedding=True,
                                   rng_key=k_param,
                                   assume_onehot=True)
    cond_tab = embedder_tab(batch)
    out_tab = cond_tab['c_crossattn'][1]
    jax.block_until_ready(out_tab)
    assert jnp.allclose(out_tab, ref_small, atol=2e-2, rtol=2e-2)

    print("KERNEL_OK")
</pallas_src>

<mosaic_0001>
module attributes {stable_mosaic.version = 11 : i64} {
  func.func @_loc_mlp_kernel(%arg0: memref<8x3xf32, #tpu.memory_space<vmem>>, %arg1: memref<3x128xf32, #tpu.memory_space<vmem>>, %arg2: memref<1x128xf32, #tpu.memory_space<vmem>>, %arg3: memref<128x128xbf16, #tpu.memory_space<vmem>>, %arg4: memref<1x128xf32, #tpu.memory_space<vmem>>, %arg5: memref<8x128xf32, #tpu.memory_space<vmem>>) attributes {dimension_semantics = [], scalar_prefetch = 0 : i64, scratch_operands = 0 : i64, tpu.core_type = #tpu.core_type<tc>} {
    %c0 = arith.constant 0 : index
    %c0_0 = arith.constant 0 : index
    %0 = vector.load %arg0[%c0, %c0_0] : memref<8x3xf32, #tpu.memory_space<vmem>>, vector<8x3xf32>
    %c0_1 = arith.constant 0 : index
    %c0_2 = arith.constant 0 : index
    %1 = vector.load %arg1[%c0_1, %c0_2] : memref<3x128xf32, #tpu.memory_space<vmem>>, vector<3x128xf32>
    %cst = arith.constant dense<0.000000e+00> : vector<8x128xf32>
    %2 = tpu.matmul %0, %1, %cst {dimension_numbers = #tpu.dot_dimension_numbers<[1], [0], [0], [1], [0, 0, 1, 1], [], []>} : vector<8x3xf32>, vector<3x128xf32>, vector<8x128xf32> -> vector<8x128xf32>
    %c0_3 = arith.constant 0 : index
    %c0_4 = arith.constant 0 : index
    %3 = vector.load %arg2[%c0_3, %c0_4] : memref<1x128xf32, #tpu.memory_space<vmem>>, vector<1x128xf32>
    %4 = vector.broadcast %3 : vector<1x128xf32> to vector<8x128xf32>
    %5 = arith.addf %2, %4 : vector<8x128xf32>
    %cst_5 = arith.constant 0.000000e+00 : f32
    %6 = vector.broadcast %cst_5 : f32 to vector<8x128xf32>
    %7 = arith.maximumf %5, %6 : vector<8x128xf32>
    %8 = arith.truncf %7 : vector<8x128xf32> to vector<8x128xbf16>
    %c0_6 = arith.constant 0 : index
    %c0_7 = arith.constant 0 : index
    %9 = vector.load %arg3[%c0_6, %c0_7] : memref<128x128xbf16, #tpu.memory_space<vmem>>, vector<128x128xbf16>
    %cst_8 = arith.constant dense<0.000000e+00> : vector<8x128xf32>
    %10 = tpu.matmul %8, %9, %cst_8 {dimension_numbers = #tpu.dot_dimension_numbers<[1], [0], [0], [1], [0, 0, 1, 1], [], []>} : vector<8x128xbf16>, vector<128x128xbf16>, vector<8x128xf32> -> vector<8x128xf32>
    %c0_9 = arith.constant 0 : index
    %c0_10 = arith.constant 0 : index
    %11 = vector.load %arg4[%c0_9, %c0_10] : memref<1x128xf32, #tpu.memory_space<vmem>>, vector<1x128xf32>
    %12 = vector.broadcast %11 : vector<1x128xf32> to vector<8x128xf32>
    %13 = arith.addf %10, %12 : vector<8x128xf32>
    %c0_11 = arith.constant 0 : index
    %c0_12 = arith.constant 0 : index
    %14 = vector.load %arg5[%c0_11, %c0_12] : memref<8x128xf32, #tpu.memory_space<vmem>>, vector<8x128xf32>
    tpu.vector_store %arg5[%c0_11, %c0_12], %13 {strides = array<i32>} : memref<8x128xf32, #tpu.memory_space<vmem>>, vector<8x128xf32>,
    return
  }
}

</mosaic_0001>

<llo_original>
// kernel: tpu_custom_call.1
$region0: #{tpu_custom_call.1}
  #allocation0 [shape = 'u32[]', space=smem, size = 0x4, offset = 0x4, fixed_abs, tag = 'smem constant byte address 0x4 - core index']
  #allocation1 [shape = 'u32[72,128]{1,0:T(1,128)}', space=vmem, size = 0x9000, scoped, tag = 'internal scratch']
  %s0 = inlined_call_operand.vmem [shape: f32[8,3], index: 0, kind: input, shape index: {}]
  %s1 = inlined_call_operand.vmem [shape: f32[3,128], index: 1, kind: input, shape index: {}]
  %s2 = inlined_call_operand.vmem [shape: f32[1,128], index: 2, kind: input, shape index: {}]
  %s3 = inlined_call_operand.hbm [shape: bf16[128,128], index: 3, kind: input, shape index: {}]
  %s4 = inlined_call_operand.vmem [shape: f32[1,128], index: 4, kind: input, shape index: {}]
  %s5 = inlined_call_operand.hbm [shape: f32[8,128], index: 5, kind: output, shape index: {}]
  %s6 = sld [smem:[#allocation0]]
  $region34: #{tpu_custom_call.1} parent=0
    _
  %s8 = ssub.s32 1, %s6
  %s9 = scalar_select 0, %s8, %s6
  $region1: #{tpu_custom_call.1} parent=0
    #allocation2 [shape = 'u8[32768]{0}', space=vmem, size = 0x8000, scoped, tag = 'input window, operand 3, single buffered']
    #allocation3 [shape = 's32[1]{0}', space=sflag, size = 0x4, scoped, tag = 'scoped memory for tpu_custom_call.1']
    #allocation4 [shape = 's32[1]{0}', space=sflag, size = 0x4, scoped, tag = 'scoped memory for tpu_custom_call.1']
    #allocation5 [shape = 'u8[4096]{0}', space=vmem, size = 0x1000, scoped, tag = 'output window, operand 0, single buffered']
    %10 = vsyncpa [#allocation3], 0
    %11 = vsyncpa [#allocation4], 0
    // Predicated region
    $region2: #{tpu_custom_call.1} parent=1 // pred_check
      _
    $region3: #{tpu_custom_call.1} parent=1 // pred_check_branch
      %13 = sbr.rel (0) target = $region5
    $region4: #{tpu_custom_call.1} parent=1 // pred_region
      _
    $region5: #{tpu_custom_call.1} parent=1 // pred_fallthru
      _
    // Predicated region
    $region6: #{tpu_custom_call.1} parent=1 // pred_check
      _
    $region7: #{tpu_custom_call.1} parent=1 // pred_check_branch
      %15 = sbr.rel (0) target = $region9
    $region8: #{tpu_custom_call.1} parent=1 // pred_region
      _
    $region9: #{tpu_custom_call.1} parent=1 // pred_fallthru
      _
    // Predicated region
    $region10: #{tpu_custom_call.1} parent=1 // pred_check
      _
    $region11: #{tpu_custom_call.1} parent=1 // pred_check_branch
      %17 = sbr.rel (0) target = $region13
    $region12: #{tpu_custom_call.1} parent=1 // pred_region
      _
    $region13: #{tpu_custom_call.1} parent=1 // pred_fallthru
      _
    // Predicated region
    $region14: #{tpu_custom_call.1} parent=1 // pred_check
      _
    $region15: #{tpu_custom_call.1} parent=1 // pred_check_branch
      %19 = sbr.rel (0) target = $region17
    $region16: #{tpu_custom_call.1} parent=1 // pred_region
      %21 = vsyncadd [#allocation3], 0
      %s22 = sshll.u32 %s3, 4
      %s23 = int_to_ptr.hbm [resolvable:$true] %s22
      %s24 = sshll.u32 [#allocation2], 4
      %s25 = int_to_ptr.vmem [resolvable:$true] %s24
      %30 = dma.hbm_to_vmem [thread:$0]  %s23, 1024, %s25, [#allocation3], 64, 64, 4
    $region17: #{tpu_custom_call.1} parent=1 // pred_fallthru
      _
    // Predicated region
    $region18: #{tpu_custom_call.1} parent=1 // pred_check
      _
    $region19: #{tpu_custom_call.1} parent=1 // pred_check_branch
      %32 = sbr.rel (0) target = $region21
    $region20: #{tpu_custom_call.1} parent=1 // pred_region
      _
    $region21: #{tpu_custom_call.1} parent=1 // pred_fallthru
      _
    // Predicated region
    $region22: #{tpu_custom_call.1} parent=1 // pred_check
      _
    $region23: #{tpu_custom_call.1} parent=1 // pred_check_branch
      %34 = sbr.rel (0) target = $region25
    $region24: #{tpu_custom_call.1} parent=1 // pred_region
      %36 = dma.done [#allocation3], 1024
    $region25: #{tpu_custom_call.1} parent=1 // pred_fallthru
      _
    %v37 = vld [vmem:[%s0] sm:$0xff]
    %v38 = vld [vmem:[%s1] sm:$0x7]
    %v39 = vld [vmem:[%s2] sm:$0x1]
    %v41 = vperm.slane %v39, 0
    %vm43 = vcmask 23552
    %v45 = vsel %vm43, %v37, 0
    %vm47 = vcmask 1042432
    %v49 = vsel %vm47, %v38, 0
    %51 = vmatpush.msra.mxu0 0.0
    %52 = vmatpush.msra.mxu0 0.0
    %53 = vmatpush.msra.mxu0 0.0
    %54 = vmatpush.msra.mxu0 0.0
    %55 = vmatpush.msra.mxu0 0.0
    %56 = vmatpush.msra.mxu0 0.0
    %57 = vmatpush.msra.mxu0 0.0
    %58 = vmatpush.msra.mxu0 0.0
    %59 = vmatpush.msra.mxu0 0.0
    %60 = vmatpush.msra.mxu0 0.0
    %61 = vmatpush.msra.mxu0 0.0
    %62 = vmatpush.msra.mxu0 0.0
    %63 = vmatpush.msra.mxu0 0.0
    %64 = vmatpush.msra.mxu0 0.0
    %65 = vmatpush.msra.mxu0 0.0
    %66 = vmatpush.msra.mxu0 %v49
    %67 = vmatmul.f32.gmra.mxu0 %v45
    %v68 = vpop.f32.mrf.mxu0
    %v69 = vadd.f32 %v41, %v68
    %70 = vdwg.mxu0
    %v71 = vmax.f32 %v69, 0.0
    %v72 = vpack.c.bf16 %v71, %v71
    %v73 = vld [vmem:[#allocation2] sm:$0xf]
    %v74 = vld [vmem:[#allocation2 + $0x4] sm:$0xf]
    %v75 = vld [vmem:[#allocation2 + $0x8] sm:$0xf]
    %v76 = vld [vmem:[#allocation2 + $0xc] sm:$0xf]
    %v77 = vld [vmem:[#allocation2 + $0x10] sm:$0xf]
    %v78 = vld [vmem:[#allocation2 + $0x14] sm:$0xf]
    %v79 = vld [vmem:[#allocation2 + $0x18] sm:$0xf]
    %v80 = vld [vmem:[#allocation2 + $0x1c] sm:$0xf]
    %v81 = vld [vmem:[#allocation2 + $0x20] sm:$0xf]
    %v82 = vld [vmem:[#allocation2 + $0x24] sm:$0xf]
    %v83 = vld [vmem:[#allocation2 + $0x28] sm:$0xf]
    %v84 = vld [vmem:[#allocation2 + $0x2c] sm:$0xf]
    %v85 = vld [vmem:[#allocation2 + $0x30] sm:$0xf]
    %v86 = vld [vmem:[#allocation2 + $0x34] sm:$0xf]
    %v87 = vld [vmem:[#allocation2 + $0x38] sm:$0xf]
    %v88 = vld [vmem:[#allocation2 + $0x3c] sm:$0xf]
    %v89 = vld [vmem:[%s4] sm:$0x1]
    %v91 = vperm.slane %v89, 0
    %v109 = vunpack.c.l.b16 %v73
    %v110 = vunpack.c.l.b16 %v74
    %v111 = vunpack.c.l.b16 %v75
    %v112 = vunpack.c.l.b16 %v76
    %v113 = vunpack.c.l.b16 %v77
    %v114 = vunpack.c.l.b16 %v78
    %v115 = vunpack.c.l.b16 %v79
    %v116 = vunpack.c.l.b16 %v80
    %v117 = vunpack.c.l.b16 %v81
    %v118 = vunpack.c.l.b16 %v82
    %v119 = vunpack.c.l.b16 %v83
    %v120 = vunpack.c.l.b16 %v84
    %v121 = vunpack.c.l.b16 %v85
    %v122 = vunpack.c.l.b16 %v86
    %v123 = vunpack.c.l.b16 %v87
    %v124 = vunpack.c.l.b16 %v88
    %v125 = vpack.c.b16 %v110, %v109
    %v126 = vpack.c.b16 %v112, %v111
    %v127 = vpack.c.b16 %v114, %v113
    %v128 = vpack.c.b16 %v116, %v115
    %v129 = vpack.c.b16 %v118, %v117
    %v130 = vpack.c.b16 %v120, %v119
    %v131 = vpack.c.b16 %v122, %v121
    %v132 = vpack.c.b16 %v124, %v123
    %141 = vmatpush.bf16.msra.mxu0 %v132
    %142 = vmatpush.bf16.msra.mxu0 %v131
    %143 = vmatpush.bf16.msra.mxu0 %v130
    %144 = vmatpush.bf16.msra.mxu0 %v129
    %145 = vmatpush.bf16.msra.mxu0 %v128
    %146 = vmatpush.bf16.msra.mxu0 %v127
    %147 = vmatpush.bf16.msra.mxu0 %v126
    %148 = vmatpush.bf16.msra.mxu0 %v125
    %149 = vmatmul.bf16.gmra.mxu0 %v72
    %v150 = vpop.f32.mrf.mxu0
    %v151 = vadd.f32 %v91, %v150
    %v152 = vpop.f32.mrf.mxu0
    %153 = vdwg.mxu0
    %154 = vst [vmem:[#allocation5] sm:$0xff] %v151
    // Predicated region
    $region26: #{tpu_custom_call.1} parent=1 // pred_check
      _
    $region27: #{tpu_custom_call.1} parent=1 // pred_check_branch
      %156 = sbr.rel (0) target = $region29
    $region28: #{tpu_custom_call.1} parent=1 // pred_region
      %158 = vsyncadd [#allocation4], 0
      %s160 = sshll.u32 [#allocation5], 4
      %s161 = int_to_ptr.vmem [resolvable:$true] %s160
      %s162 = sshll.u32 %s5, 4
      %s163 = int_to_ptr.hbm [resolvable:$true] %s162
      %165 = dma.vmem_to_hbm [thread:$0]  %s161, 128, %s163, [#allocation4]
    $region29: #{tpu_custom_call.1} parent=1 // pred_fallthru
      _
    // Predicated region
    $region30: #{tpu_custom_call.1} parent=1 // pred_check
      _
    $region31: #{tpu_custom_call.1} parent=1 // pred_check_branch
      %167 = sbr.rel (0) target = $region33
    $region32: #{tpu_custom_call.1} parent=1 // pred_region
      %169 = dma.done [#allocation4], 128
    $region33: #{tpu_custom_call.1} parent=1 // pred_fallthru
      _
    %170 = vsyncpa [#allocation3], 1
    %171 = vsyncpa [#allocation4], 1

</llo_original>
